<compile_context>
chip_gen: v7x
topology: tpu7x:2x2x1
jax: 0.10.0
libtpu: 0.0.40
codegen_flags: <defaults>
</compile_context>

<pallas_src>
import functools
import math

import jax
import jax.numpy as jnp
from jax import lax
from jax.experimental import pallas as pl
from jax.experimental.pallas import tpu as pltpu


def _tfcomplexity_kernel(attr_ref, out_ref, s1_ref, s2_ref, *,
                         n_total, n_tile, ragged, use_mxu):
    """Single-pass entropy of normalized |attr| over the lane (N) axis."""
    k = pl.program_id(1)

    @pl.when(k == 0)
    def _init():
        s1_ref[...] = jnp.zeros_like(s1_ref)
        s2_ref[...] = jnp.zeros_like(s2_ref)

    a = jnp.abs(attr_ref[...].astype(jnp.float32)) + 1e-8   # in-kernel upcast
    al = a * jnp.log(a)

    if ragged:
        # Tail lanes of the last k block are outside the real N extent; their
        # padded contents are unspecified, so select them out of both sums.
        col = k * n_tile + lax.broadcasted_iota(jnp.int32, a.shape, 1)
        valid = col < n_total
        a = jnp.where(valid, a, 0.0)
        al = jnp.where(valid, al, 0.0)

    if use_mxu:
        # Offload the two lane reductions to the MXU (vmatmul slot) — useful
        # when the v7x VALU/EUP slots are the bottleneck instead of HBM.
        ones = jnp.ones((a.shape[-1], 1), jnp.float32)
        s1_ref[...] += jnp.dot(a, ones, preferred_element_type=jnp.float32)
        s2_ref[...] += jnp.dot(al, ones, preferred_element_type=jnp.float32)
    else:
        s1_ref[...] += jnp.sum(a, axis=-1, keepdims=True)       # sum a
        s2_ref[...] += jnp.sum(al, axis=-1, keepdims=True)      # sum a*log a

    @pl.when(k == pl.num_programs(1) - 1)
    def _finalize():
        c = s1_ref[...]
        # H = log(c) - sum(a*log a) / c
        out_ref[...] = jnp.log(c) - s2_ref[...] / c


def _device_profile():
    """Generation-dependent VMEM budgets (heuristic, safe defaults)."""
    kind = ""
    try:
        kind = (jax.devices()[0].device_kind or "").lower()
    except Exception:
        pass
    is_v7 = ("v7" in kind) or ("7x" in kind)
    return dict(
        multi_tc=is_v7,                                   # 2 TensorCores / chip
        # Budget is f32-equivalent bytes per input tile (upcast intermediates
        # scale with element count, not raw input bytes).
        tile_budget_bytes=(6 << 20) if is_v7 else (8 << 20),
        # v7x: 64 MiB physical VMEM.  v5e/v6e: 128 MiB physical, but v5e's
        # scoped default is only 16 MiB -> always pass an explicit limit.
        vmem_limit_bytes=(48 << 20) if is_v7 else (64 << 20),
    )


def _choose_tiles(rows, n, row_tile, n_tile, prof):
    elem_budget = prof["tile_budget_bytes"] // 4          # f32-equiv elements

    if n_tile is None:
        if n * 8 <= elem_budget:
            n_tile = n                                     # full width (legal)
        else:
            max_lanes = max(128, (elem_budget // 8) // 128 * 128)
            n_tile = 0
            for cand in (32768, 16384, 8192, 4096, 2048, 1024, 512, 256, 128):
                if cand <= max_lanes and n % cand == 0:
                    n_tile = cand
                    break
            if n_tile == 0:
                # No aligned divisor fits the budget: keep a full-size
                # 128-aligned tile and mask the ragged tail in-kernel.
                n_tile = min(max_lanes, ((n + 127) // 128) * 128)
    else:
        assert n_tile == n or n_tile % 128 == 0, \
            "n_tile must equal N or be a multiple of 128"

    if row_tile is None:
        by_budget = max(8, elem_budget // max(1, n_tile))
        row_tile = min(8192, (by_budget // 8) * 8)         # cap raised (was 1024)
        rows_rounded = ((rows + 7) // 8) * 8
        row_tile = max(8, min(row_tile, rows_rounded))
        # v7x: guarantee >= 2 row blocks so both TensorCores get work.
        if prof["multi_tc"] and rows > 8 and pl.cdiv(rows, row_tile) < 2:
            row_tile = max(8, (((rows_rounded // 2) + 7) // 8) * 8)
    else:
        assert row_tile == rows or row_tile % 8 == 0, \
            "row_tile must equal rows or be a multiple of 8"

    return row_tile, n_tile


def tf_complexity(x, attr, mask, *, row_tile=None, n_tile=None,
                  vmem_limit_bytes=None, use_mxu_reduce=False):
    """Pallas TPU implementation of TFComplexity.forward.

    x and mask are accepted for signature parity with the PyTorch module but
    are unused (exactly as in the reference forward).
    """
    del x, mask
    b, m = attr.shape[0], attr.shape[1]
    n = math.prod(attr.shape[2:])
    rows = b * m

    # Contiguous reshape only -- no host-side pad/concat/astype HBM passes.
    attr2d = attr.reshape(rows, n)

    prof = _device_profile()
    row_tile, n_tile = _choose_tiles(rows, n, row_tile, n_tile, prof)
    ragged = (n % n_tile) != 0
    if vmem_limit_bytes is None:
        vmem_limit_bytes = prof["vmem_limit_bytes"]

    grid = (pl.cdiv(rows, row_tile), pl.cdiv(n, n_tile))

    kernel = functools.partial(
        _tfcomplexity_kernel,
        n_total=n, n_tile=n_tile, ragged=ragged, use_mxu=use_mxu_reduce)

    out = pl.pallas_call(
        kernel,
        out_shape=jax.ShapeDtypeStruct((rows, 1), jnp.float32),
        grid_spec=pltpu.PrefetchScalarGridSpec(
            num_scalar_prefetch=0,
            grid=grid,
            in_specs=[pl.BlockSpec((row_tile, n_tile), lambda i, k: (i, k))],
            out_specs=pl.BlockSpec((row_tile, 1), lambda i, k: (i, 0)),
            scratch_shapes=[
                pltpu.VMEM((row_tile, 1), jnp.float32),
                pltpu.VMEM((row_tile, 1), jnp.float32),
            ],
        ),
        compiler_params=pltpu.CompilerParams(
            dimension_semantics=("parallel", "arbitrary"),
            vmem_limit_bytes=vmem_limit_bytes),
    )(attr2d)

    return out[:, 0].reshape(b, m)


def tf_complexity_ref(attr):
    """Pure-JAX reference mirroring the PyTorch forward."""
    b, m = attr.shape[0], attr.shape[1]
    a = jnp.abs(attr.reshape(b, m, -1)).astype(jnp.float32) + 1e-8
    c = a.sum(axis=-1)
    ci = a / c[..., None]
    return -(ci * jnp.log(ci)).sum(axis=-1)


if __name__ == "__main__":
    key = jax.random.PRNGKey(0)
    kx, ka, km, ka2 = jax.random.split(key, 4)

    # Test 1: the module's natural shapes.
    batch, m, h, w = 2, 4, 16, 16
    x = jax.random.normal(kx, (batch, 3, h, w), jnp.float32)       # unused
    attr = jax.random.normal(ka, (batch, m, h, w), jnp.float32)
    mask = (jax.random.uniform(km, (batch, 1, h, w)) > 0.5).astype(jnp.float32)  # unused

    out = jax.block_until_ready(tf_complexity(x, attr, mask))
    ref = tf_complexity_ref(attr)
    assert out.shape == (batch, m)
    assert jnp.allclose(out, ref, rtol=1e-5, atol=1e-5), (out, ref)

    # Test 2: ragged rows (6 not a multiple of 8) + ragged lanes (330 % 128 != 0)
    # with a manual n_tile, exercising the in-kernel tail-lane masking and the
    # multi-step reduction path.
    attr2 = jax.random.normal(ka2, (3, 2, 10, 33), jnp.float32)
    out2 = jax.block_until_ready(tf_complexity(None, attr2, None, n_tile=128))
    ref2 = tf_complexity_ref(attr2)
    assert out2.shape == (3, 2)
    assert jnp.allclose(out2, ref2, rtol=1e-5, atol=1e-5), (out2, ref2)

    print("KERNEL_OK")
</pallas_src>

<mosaic_0001>
module attributes {stable_mosaic.version = 11 : i64} {
  func.func @_tfcomplexity_kernel(%arg0: i32, %arg1: i32, %arg2: memref<8x256xf32, #tpu.memory_space<vmem>>, %arg3: memref<8x1xf32, #tpu.memory_space<vmem>>, %arg4: memref<8x1xf32, #tpu.memory_space<vmem>>, %arg5: memref<8x1xf32, #tpu.memory_space<vmem>>) attributes {dimension_semantics = [#tpu.dimension_semantics<parallel>, #tpu.dimension_semantics<arbitrary>], iteration_bounds = array<i64: 1, 1>, scalar_prefetch = 0 : i64, scratch_operands = 2 : i64, tpu.core_type = #tpu.core_type<tc>, window_params = [{transform_indices = @transform_0, window_bounds = array<i64: 8, 256>}, {transform_indices = @transform_1, window_bounds = array<i64: 8, 1>}]} {
    %c0_i32 = arith.constant 0 : i32
    %0 = arith.cmpi eq, %arg1, %c0_i32 : i32
    %1 = arith.extui %0 : i1 to i32
    %c0_i32_0 = arith.constant 0 : i32
    %2 = arith.cmpi ne, %1, %c0_i32_0 : i32
    scf.if %2 {
      %cst_14 = arith.constant 0.000000e+00 : f32
      %22 = vector.broadcast %cst_14 : f32 to vector<8x1xf32>
      %c0_15 = arith.constant 0 : index
      %c0_16 = arith.constant 0 : index
      %23 = vector.load %arg4[%c0_15, %c0_16] : memref<8x1xf32, #tpu.memory_space<vmem>>, vector<8x1xf32>
      tpu.vector_store %arg4[%c0_15, %c0_16], %22 {strides = array<i32>} : memref<8x1xf32, #tpu.memory_space<vmem>>, vector<8x1xf32>,
      %cst_17 = arith.constant 0.000000e+00 : f32
      %24 = vector.broadcast %cst_17 : f32 to vector<8x1xf32>
      %c0_18 = arith.constant 0 : index
      %c0_19 = arith.constant 0 : index
      %25 = vector.load %arg5[%c0_18, %c0_19] : memref<8x1xf32, #tpu.memory_space<vmem>>, vector<8x1xf32>
      tpu.vector_store %arg5[%c0_18, %c0_19], %24 {strides = array<i32>} : memref<8x1xf32, #tpu.memory_space<vmem>>, vector<8x1xf32>,
    } else {
    }
    %c0 = arith.constant 0 : index
    %c0_1 = arith.constant 0 : index
    %3 = vector.load %arg2[%c0, %c0_1] : memref<8x256xf32, #tpu.memory_space<vmem>>, vector<8x256xf32>
    %4 = math.absf %3 : vector<8x256xf32>
    %cst = arith.constant 9.99999993E-9 : f32
    %5 = vector.broadcast %cst : f32 to vector<8x256xf32>
    %6 = arith.addf %4, %5 : vector<8x256xf32>
    %7 = math.log %6 : vector<8x256xf32>
    %8 = arith.mulf %6, %7 : vector<8x256xf32>
    %c0_2 = arith.constant 0 : index
    %c0_3 = arith.constant 0 : index
    %9 = vector.load %arg4[%c0_2, %c0_3] : memref<8x1xf32, #tpu.memory_space<vmem>>, vector<8x1xf32>
    %cst_4 = arith.constant dense<0.000000e+00> : vector<8xf32>
    %10 = vector.multi_reduction <add>, %6, %cst_4 [1] : vector<8x256xf32> to vector<8xf32>
    %11 = vector.shape_cast %10 : vector<8xf32> to vector<8x1xf32>
    %12 = arith.addf %9, %11 : vector<8x1xf32>
    %c0_5 = arith.constant 0 : index
    %c0_6 = arith.constant 0 : index
    %13 = vector.load %arg4[%c0_5, %c0_6] : memref<8x1xf32, #tpu.memory_space<vmem>>, vector<8x1xf32>
    tpu.vector_store %arg4[%c0_5, %c0_6], %12 {strides = array<i32>} : memref<8x1xf32, #tpu.memory_space<vmem>>, vector<8x1xf32>,
    %c0_7 = arith.constant 0 : index
    %c0_8 = arith.constant 0 : index
    %14 = vector.load %arg5[%c0_7, %c0_8] : memref<8x1xf32, #tpu.memory_space<vmem>>, vector<8x1xf32>
    %cst_9 = arith.constant dense<0.000000e+00> : vector<8xf32>
    %15 = vector.multi_reduction <add>, %8, %cst_9 [1] : vector<8x256xf32> to vector<8xf32>
    %16 = vector.shape_cast %15 : vector<8xf32> to vector<8x1xf32>
    %17 = arith.addf %14, %16 : vector<8x1xf32>
    %c0_10 = arith.constant 0 : index
    %c0_11 = arith.constant 0 : index
    %18 = vector.load %arg5[%c0_10, %c0_11] : memref<8x1xf32, #tpu.memory_space<vmem>>, vector<8x1xf32>
    tpu.vector_store %arg5[%c0_10, %c0_11], %17 {strides = array<i32>} : memref<8x1xf32, #tpu.memory_space<vmem>>, vector<8x1xf32>,
    %c0_i32_12 = arith.constant 0 : i32
    %19 = arith.cmpi eq, %arg1, %c0_i32_12 : i32
    %20 = arith.extui %19 : i1 to i32
    %c0_i32_13 = arith.constant 0 : i32
    %21 = arith.cmpi ne, %20, %c0_i32_13 : i32
    scf.if %21 {
      %c0_14 = arith.constant 0 : index
      %c0_15 = arith.constant 0 : index
      %22 = vector.load %arg4[%c0_14, %c0_15] : memref<8x1xf32, #tpu.memory_space<vmem>>, vector<8x1xf32>
      %23 = math.log %22 : vector<8x1xf32>
      %c0_16 = arith.constant 0 : index
      %c0_17 = arith.constant 0 : index
      %24 = vector.load %arg5[%c0_16, %c0_17] : memref<8x1xf32, #tpu.memory_space<vmem>>, vector<8x1xf32>
      %25 = arith.divf %24, %22 : vector<8x1xf32>
      %26 = arith.subf %23, %25 : vector<8x1xf32>
      %c0_18 = arith.constant 0 : index
      %c0_19 = arith.constant 0 : index
      %27 = vector.load %arg3[%c0_18, %c0_19] : memref<8x1xf32, #tpu.memory_space<vmem>>, vector<8x1xf32>
      tpu.vector_store %arg3[%c0_18, %c0_19], %26 {strides = array<i32>} : memref<8x1xf32, #tpu.memory_space<vmem>>, vector<8x1xf32>,
    } else {
    }
    return
  }
  func.func @transform_0(%arg0: i32, %arg1: i32) -> (i32, i32) {
    %c0_i32 = arith.constant 0 : i32
    return %arg0, %arg1 : i32, i32
  }
  func.func @transform_1(%arg0: i32, %arg1: i32) -> (i32, i32) {
    %c0_i32 = arith.constant 0 : i32
    %c0_i32_0 = arith.constant 0 : i32
    return %arg0, %c0_i32 : i32, i32
  }
}

</mosaic_0001>

<llo_original>
// kernel: tpu_custom_call.1
$region0: #{tpu_custom_call.1}
  #allocation0 [shape = 'u32[]', space=smem, size = 0x4, offset = 0x4, fixed_abs, tag = 'smem constant byte address 0x4 - core index']
  #allocation1 [shape = 'u32[144,128]{1,0:T(1,128)}', space=vmem, size = 0x12000, scoped, tag = 'internal scratch']
  #allocation2 [shape = 'f32[8,1]{1,0:T(8,128)}', space=vmem, size = 0x1000, scoped, tag = 'scratch operand']
  #allocation3 [shape = 'f32[8,1]{1,0:T(8,128)}', space=vmem, size = 0x1000, scoped, tag = 'scratch operand']
  %s0 = inlined_call_operand.hbm [shape: f32[8,256], index: 0, kind: input, shape index: {}]
  %s1 = inlined_call_operand.hbm [shape: f32[8,1], index: 1, kind: output, shape index: {}]
  %s2 = sld [smem:[#allocation0]]
  $region26: #{tpu_custom_call.1} parent=0
    _
  %s4 = ssub.s32 1, %s2
  %s5 = scalar_select 0, %s4, %s2
  $region1: #{tpu_custom_call.1} parent=0
    #allocation4 [shape = 'u8[8192]{0}', space=vmem, size = 0x2000, scoped, tag = 'input window, operand 0, single buffered']
    #allocation5 [shape = 's32[1]{0}', space=sflag, size = 0x4, scoped, tag = 'scoped memory for tpu_custom_call.1']
    #allocation6 [shape = 's32[1]{0}', space=sflag, size = 0x4, scoped, tag = 'scoped memory for tpu_custom_call.1']
    #allocation7 [shape = 'u8[4096]{0}', space=vmem, size = 0x1000, scoped, tag = 'output window, operand 0, single buffered']
    %6 = vsyncpa [#allocation5], 0
    %7 = vsyncpa [#allocation6], 0
    // Predicated region
    $region2: #{tpu_custom_call.1} parent=1 // pred_check
      _
    $region3: #{tpu_custom_call.1} parent=1 // pred_check_branch
      %9 = sbr.rel (0) target = $region5
    $region4: #{tpu_custom_call.1} parent=1 // pred_region
      %s11 = ssub.s32 256, 256
      %12 = vsyncadd [#allocation5], %s11
      %s14 = sshll.u32 [#allocation4], 4
      %s15 = int_to_ptr.vmem [resolvable:$true] %s14
      %17 = dma.hbm_to_vmem [thread:$0]  %s0, 256, %s15, [#allocation5]
    $region5: #{tpu_custom_call.1} parent=1 // pred_fallthru
      _
    // Predicated region
    $region6: #{tpu_custom_call.1} parent=1 // pred_check
      _
    $region7: #{tpu_custom_call.1} parent=1 // pred_check_branch
      %19 = sbr.rel (0) target = $region9
    $region8: #{tpu_custom_call.1} parent=1 // pred_region
      %20 = dma.done [#allocation5], 256
    $region9: #{tpu_custom_call.1} parent=1 // pred_fallthru
      _
    %p21 = scmp.eq.s32.totalorder 0, 0
    // Predicated region
    $region10: #{tpu_custom_call.1} parent=1 // pred_check
      %p22 = pneg %p21
    $region11: #{tpu_custom_call.1} parent=1 // pred_check_branch
      %24 = sbr.rel (%p22) target = $region13
    $region12: #{tpu_custom_call.1} parent=1 // pred_region
      %vm25 = vcmask 7168
      %26 = vst.msk [vmem:[#allocation2] sm:$0xff] %vm25, 0.0
      %27 = vst.msk [vmem:[#allocation3] sm:$0xff] %vm25, 0.0
    $region13: #{tpu_custom_call.1} parent=1 // pred_fallthru
      _
    %v28 = vld [vmem:[#allocation4] sm:$0xff]
    %v29 = vld [vmem:[#allocation4 + $0x8] sm:$0xff]
    %v30 = vand.u32 2147483647, %v28
    %v31 = vand.u32 2147483647, %v29
    %v32 = vadd.f32 %v30, 1e-08
    %v33 = vadd.f32 %v31, 1e-08
    %v34 = vlog2.pop %v32
    %v35 = vmul.f32 %v34, 0.6931472
    %v36 = vlog2.pop %v33
    %v37 = vmul.f32 %v36, 0.6931472
    %v38 = vmul.f32 %v32, %v35
    %v39 = vmul.f32 %v33, %v37
    %v40 = vld [vmem:[#allocation2] sm:$0xff]
    %v41 = vadd.f32 %v32, %v33
    %42 = vadd.xlane.f32.xlu0 %v41
    %v43 = vpop.xlane.xlu0 %42
    %v44 = vadd.f32 %v40, %v43
    %vm45 = vcmask 7168
    %46 = vst.msk [vmem:[#allocation2] sm:$0xff] %vm45, %v44
    %v47 = vld [vmem:[#allocation3] sm:$0xff]
    %v48 = vadd.f32 %v38, %v39
    %49 = vadd.xlane.f32.xlu0 %v48
    %v50 = vpop.xlane.xlu0 %49
    %v51 = vadd.f32 %v47, %v50
    %52 = vst.msk [vmem:[#allocation3] sm:$0xff] %vm45, %v51
    // Predicated region
    $region14: #{tpu_custom_call.1} parent=1 // pred_check
      %p53 = pneg %p21
    $region15: #{tpu_custom_call.1} parent=1 // pred_check_branch
      %55 = sbr.rel (%p53) target = $region17
    $region16: #{tpu_custom_call.1} parent=1 // pred_region
      %v56 = vld [vmem:[#allocation2] sm:$0xff]
      %v57 = vlog2.pop %v56
      %v58 = vmul.f32 %v57, 0.6931472
      %v59 = vld [vmem:[#allocation3] sm:$0xff]
      %v60 = vrcp.pop %v56
      %v61 = vmul.f32 %v59, %v60
      %v62 = vsub.f32 %v58, %v61
      %63 = vst.msk [vmem:[#allocation7] sm:$0xff] %vm45, %v62
    $region17: #{tpu_custom_call.1} parent=1 // pred_fallthru
      _
    // Predicated region
    $region18: #{tpu_custom_call.1} parent=1 // pred_check
      _
    $region19: #{tpu_custom_call.1} parent=1 // pred_check_branch
      %65 = sbr.rel (0) target = $region21
    $region20: #{tpu_custom_call.1} parent=1 // pred_region
      %s67 = ssub.s32 128, 128
      %68 = vsyncadd [#allocation6], %s67
      %s70 = sshll.u32 [#allocation7], 4
      %s71 = int_to_ptr.vmem [resolvable:$true] %s70
      %73 = dma.vmem_to_hbm [thread:$0]  %s71, 128, %s1, [#allocation6]
    $region21: #{tpu_custom_call.1} parent=1 // pred_fallthru
      _
    // Predicated region
    $region22: #{tpu_custom_call.1} parent=1 // pred_check
      _
    $region23: #{tpu_custom_call.1} parent=1 // pred_check_branch
      %75 = sbr.rel (0) target = $region25
    $region24: #{tpu_custom_call.1} parent=1 // pred_region
      %76 = dma.done [#allocation6], 128
    $region25: #{tpu_custom_call.1} parent=1 // pred_fallthru
      _
    %77 = vsyncpa [#allocation5], 1
    %78 = vsyncpa [#allocation6], 1

</llo_original>
